<compile_context>
chip_gen: v7x
topology: tpu7x:2x2x1
jax: 0.10.0
libtpu: 0.0.40
codegen_flags: <defaults>
</compile_context>

<pallas_src>
import jax
import jax.numpy as jnp
from jax.experimental import pallas as pl
from jax.experimental.pallas import tpu as pltpu


def _round_up(x: int, m: int) -> int:
    return ((x + m - 1) // m) * m


def _dnf_kernel(x_ref, wc_ref, wd_ref, cb_ref, db_ref, out_ref):
    # x_ref:  (TB, P)   streamed batch tile (caller dtype; cast to MXU dtype here)
    # wc_ref: (P, C)    VMEM-resident conjunction weights, math layout, mm dtype
    # wd_ref: (C, K)    VMEM-resident disjunction weights, math layout, mm dtype
    # cb_ref: (1, C)    f32: delta * (max|Wc| - sum|Wc|)   (precomputed)
    # db_ref: (1, K)    f32: delta * (sum|Wd| - max|Wd|)   (precomputed)
    x = x_ref[...].astype(wc_ref.dtype)
    conj = jnp.dot(x, wc_ref[...], preferred_element_type=jnp.float32)
    conj = jnp.tanh(conj + cb_ref[...])            # f32 bias-add + EUP tanh
    conj = conj.astype(wd_ref.dtype)               # match MXU operand dtype
    out = jnp.dot(conj, wd_ref[...], preferred_element_type=jnp.float32)
    out_ref[...] = (out + db_ref[...]).astype(out_ref.dtype)


def _prepare_dnf_params(w_conj, w_disj, delta: float, mm_dtype):
    """Batch-invariant weight prep (do once per weight update, not per call)."""
    abs_wc = jnp.abs(w_conj).astype(jnp.float32)
    conj_bias = (delta * (jnp.max(abs_wc, axis=1) - jnp.sum(abs_wc, axis=1)))[None, :]
    abs_wd = jnp.abs(w_disj).astype(jnp.float32)
    disj_bias = (delta * (jnp.sum(abs_wd, axis=1) - jnp.max(abs_wd, axis=1)))[None, :]
    return dict(
        wc=w_conj.T.astype(mm_dtype),              # (P, C) math layout
        wd=w_disj.T.astype(mm_dtype),              # (C, K) math layout
        cb=conj_bias.astype(jnp.float32),          # (1, C)
        db=disj_bias.astype(jnp.float32),          # (1, K)
    )


def _dnf_forward_from_params(x, params, batch_tile: int):
    B, P = x.shape
    P2, C = params["wc"].shape
    C2, K = params["wd"].shape
    assert P == P2 and C == C2

    # Batch tile: multiple of 16 (bf16 packed sublane quantum; also covers f32's 8).
    TB = _round_up(min(int(batch_tile), _round_up(B, 16)), 16)
    B_pad = _round_up(B, TB)
    x_in = x if B_pad == B else jnp.zeros((B_pad, P), x.dtype).at[:B].set(x)

    out = pl.pallas_call(
        _dnf_kernel,
        out_shape=jax.ShapeDtypeStruct((B_pad, K), jnp.float32),
        grid=(B_pad // TB,),
        in_specs=[
            pl.BlockSpec((TB, P), lambda i: (i, 0)),   # x: contiguous per-tile DMA
            pl.BlockSpec((P, C), lambda i: (0, 0)),    # Wc: VMEM-resident
            pl.BlockSpec((C, K), lambda i: (0, 0)),    # Wd: VMEM-resident
            pl.BlockSpec((1, C), lambda i: (0, 0)),    # conj bias: resident
            pl.BlockSpec((1, K), lambda i: (0, 0)),    # disj bias: resident
        ],
        out_specs=pl.BlockSpec((TB, K), lambda i: (i, 0)),  # true-width output
        compiler_params=pltpu.CompilerParams(
            dimension_semantics=("parallel",),         # batch-parallel (v7x megacore)
        ),
    )(x_in, params["wc"], params["wd"], params["cb"], params["db"])

    return out if B_pad == B else out[:B]


def make_dnf_classifier_forward(w_conj, w_disj, delta: float = 1.0,
                                mm_dtype=jnp.bfloat16, batch_tile: int = 4096):
    """Factory: hoists weight prep out of the per-call path, returns jitted fwd."""
    params = _prepare_dnf_params(w_conj, w_disj, delta, mm_dtype)

    @jax.jit
    def forward(x):
        return _dnf_forward_from_params(x, params, batch_tile)

    return forward


def dnf_classifier_forward(x, w_conj, w_disj, delta: float = 1.0,
                           mm_dtype=jnp.bfloat16, batch_tile: int = 4096):
    """One-shot convenience (prep + forward). Prefer the factory for repeated calls.

    x:       (B, num_preds)
    w_conj:  (num_conjuncts, num_preds)   PyTorch layout [out, in]
    w_disj:  (num_classes, num_conjuncts)
    returns: (B, num_classes)             float32
    """
    params = _prepare_dnf_params(w_conj, w_disj, delta, mm_dtype)
    return _dnf_forward_from_params(x, params, batch_tile)


def dnf_classifier_reference(x, w_conj, w_disj, delta: float = 1.0):
    """Plain-JAX reference matching the PyTorch DNF forward."""
    abs_wc = jnp.abs(w_conj)
    conj_bias = jnp.max(abs_wc, axis=1) - jnp.sum(abs_wc, axis=1)
    conj = jnp.tanh(x @ w_conj.T + delta * conj_bias[None, :])
    abs_wd = jnp.abs(w_disj)
    disj_bias = jnp.sum(abs_wd, axis=1) - jnp.max(abs_wd, axis=1)
    return conj @ w_disj.T + delta * disj_bias[None, :]


if __name__ == "__main__":
    # Small shapes consistent with the module: num_preds=16, num_conjuncts=32,
    # num_classes=8, batch=8.
    B, num_preds, num_conjuncts, num_classes = 8, 16, 32, 8
    delta = 1.0

    key = jax.random.PRNGKey(0)
    kx, kc, kd = jax.random.split(key, 3)

    # weight_init_type='normal' in the reference module -> weights ~ N(0, 0.1).
    x = jax.random.normal(kx, (B, num_preds), dtype=jnp.float32)
    w_conj = 0.1 * jax.random.normal(kc, (num_conjuncts, num_preds), dtype=jnp.float32)
    w_disj = 0.1 * jax.random.normal(kd, (num_classes, num_conjuncts), dtype=jnp.float32)

    ref = dnf_classifier_reference(x, w_conj, w_disj, delta)

    # Default (bf16 MXU operand) path via the hoisted-prep factory.
    fwd = make_dnf_classifier_forward(w_conj, w_disj, delta)  # mm_dtype=bf16
    out_bf16 = jax.block_until_ready(fwd(x))
    assert out_bf16.shape == (B, num_classes)
    assert jnp.allclose(out_bf16, ref, atol=5e-2, rtol=5e-2), "bf16 path mismatch"

    # Full-precision path (exactness check).
    out_f32 = jax.block_until_ready(
        dnf_classifier_forward(x, w_conj, w_disj, delta, mm_dtype=jnp.float32))
    assert jnp.allclose(out_f32, ref, atol=1e-5, rtol=1e-5), "f32 path mismatch"

    print("KERNEL_OK")
</pallas_src>

<mosaic_0001>
module attributes {stable_mosaic.version = 11 : i64} {
  func.func @_dnf_kernel(%arg0: i32, %arg1: memref<16x16xf32, #tpu.memory_space<vmem>>, %arg2: memref<16x32xbf16, #tpu.memory_space<vmem>>, %arg3: memref<32x8xbf16, #tpu.memory_space<vmem>>, %arg4: memref<1x32xf32, #tpu.memory_space<vmem>>, %arg5: memref<1x8xf32, #tpu.memory_space<vmem>>, %arg6: memref<16x8xf32, #tpu.memory_space<vmem>>) attributes {dimension_semantics = [#tpu.dimension_semantics<parallel>], iteration_bounds = array<i64: 1>, scalar_prefetch = 0 : i64, scratch_operands = 0 : i64, tpu.core_type = #tpu.core_type<tc>, window_params = [{transform_indices = @transform_0, window_bounds = array<i64: 16, 16>}, {pipeline_mode = #tpu.pipeline_mode<synchronous>, transform_indices = @transform_1, window_bounds = array<i64: 16, 32>}, {pipeline_mode = #tpu.pipeline_mode<synchronous>, transform_indices = @transform_2, window_bounds = array<i64: 32, 8>}, {pipeline_mode = #tpu.pipeline_mode<synchronous>, transform_indices = @transform_3, window_bounds = array<i64: 1, 32>}, {pipeline_mode = #tpu.pipeline_mode<synchronous>, transform_indices = @transform_4, window_bounds = array<i64: 1, 8>}, {transform_indices = @transform_5, window_bounds = array<i64: 16, 8>}]} {
    %c0 = arith.constant 0 : index
    %c0_0 = arith.constant 0 : index
    %0 = vector.load %arg1[%c0, %c0_0] : memref<16x16xf32, #tpu.memory_space<vmem>>, vector<16x16xf32>
    %1 = arith.truncf %0 : vector<16x16xf32> to vector<16x16xbf16>
    %c0_1 = arith.constant 0 : index
    %c0_2 = arith.constant 0 : index
    %2 = vector.load %arg2[%c0_1, %c0_2] : memref<16x32xbf16, #tpu.memory_space<vmem>>, vector<16x32xbf16>
    %cst = arith.constant dense<0.000000e+00> : vector<16x32xf32>
    %3 = tpu.matmul %1, %2, %cst {dimension_numbers = #tpu.dot_dimension_numbers<[1], [0], [0], [1], [0, 0, 1, 1], [], []>} : vector<16x16xbf16>, vector<16x32xbf16>, vector<16x32xf32> -> vector<16x32xf32>
    %c0_3 = arith.constant 0 : index
    %c0_4 = arith.constant 0 : index
    %4 = vector.load %arg4[%c0_3, %c0_4] : memref<1x32xf32, #tpu.memory_space<vmem>>, vector<1x32xf32>
    %5 = vector.broadcast %4 : vector<1x32xf32> to vector<16x32xf32>
    %6 = arith.addf %3, %5 : vector<16x32xf32>
    %7 = math.tanh %6 : vector<16x32xf32>
    %8 = arith.truncf %7 : vector<16x32xf32> to vector<16x32xbf16>
    %c0_5 = arith.constant 0 : index
    %c0_6 = arith.constant 0 : index
    %9 = vector.load %arg3[%c0_5, %c0_6] : memref<32x8xbf16, #tpu.memory_space<vmem>>, vector<32x8xbf16>
    %cst_7 = arith.constant dense<0.000000e+00> : vector<16x8xf32>
    %10 = tpu.matmul %8, %9, %cst_7 {dimension_numbers = #tpu.dot_dimension_numbers<[1], [0], [0], [1], [0, 0, 1, 1], [], []>} : vector<16x32xbf16>, vector<32x8xbf16>, vector<16x8xf32> -> vector<16x8xf32>
    %c0_8 = arith.constant 0 : index
    %c0_9 = arith.constant 0 : index
    %11 = vector.load %arg5[%c0_8, %c0_9] : memref<1x8xf32, #tpu.memory_space<vmem>>, vector<1x8xf32>
    %12 = vector.broadcast %11 : vector<1x8xf32> to vector<16x8xf32>
    %13 = arith.addf %10, %12 : vector<16x8xf32>
    %c0_10 = arith.constant 0 : index
    %c0_11 = arith.constant 0 : index
    %14 = vector.load %arg6[%c0_10, %c0_11] : memref<16x8xf32, #tpu.memory_space<vmem>>, vector<16x8xf32>
    tpu.vector_store %arg6[%c0_10, %c0_11], %13 {strides = array<i32>} : memref<16x8xf32, #tpu.memory_space<vmem>>, vector<16x8xf32>,
    return
  }
  func.func @transform_0(%arg0: i32) -> (i32, i32) {
    %c0_i32 = arith.constant 0 : i32
    %c0_i32_0 = arith.constant 0 : i32
    return %arg0, %c0_i32 : i32, i32
  }
  func.func @transform_1(%arg0: i32) -> (i32, i32) {
    %c0_i32 = arith.constant 0 : i32
    %c0_i32_0 = arith.constant 0 : i32
    %c0_i32_1 = arith.constant 0 : i32
    return %c0_i32, %c0_i32_0 : i32, i32
  }
  func.func @transform_2(%arg0: i32) -> (i32, i32) {
    %c0_i32 = arith.constant 0 : i32
    %c0_i32_0 = arith.constant 0 : i32
    %c0_i32_1 = arith.constant 0 : i32
    return %c0_i32, %c0_i32_0 : i32, i32
  }
  func.func @transform_3(%arg0: i32) -> (i32, i32) {
    %c0_i32 = arith.constant 0 : i32
    %c0_i32_0 = arith.constant 0 : i32
    %c0_i32_1 = arith.constant 0 : i32
    return %c0_i32, %c0_i32_0 : i32, i32
  }
  func.func @transform_4(%arg0: i32) -> (i32, i32) {
    %c0_i32 = arith.constant 0 : i32
    %c0_i32_0 = arith.constant 0 : i32
    %c0_i32_1 = arith.constant 0 : i32
    return %c0_i32, %c0_i32_0 : i32, i32
  }
  func.func @transform_5(%arg0: i32) -> (i32, i32) {
    %c0_i32 = arith.constant 0 : i32
    %c0_i32_0 = arith.constant 0 : i32
    return %arg0, %c0_i32 : i32, i32
  }
}

</mosaic_0001>

<llo_original>
// kernel: forward.1
$region0: #{forward.1}
  #allocation0 [shape = 'u32[]', space=smem, size = 0x4, offset = 0x4, fixed_abs, tag = 'smem constant byte address 0x4 - core index']
  #allocation1 [shape = 'u32[144,128]{1,0:T(1,128)}', space=vmem, size = 0x12000, scoped, tag = 'internal scratch']
  %s0 = inlined_call_operand.vmem [shape: f32[16,16], index: 0, kind: input, shape index: {}]
  %s1 = inlined_call_operand.vmem [shape: bf16[16,32], index: 1, kind: input, shape index: {}]
  %s2 = inlined_call_operand.vmem [shape: bf16[32,8], index: 2, kind: input, shape index: {}]
  %s3 = inlined_call_operand.vmem [shape: f32[1,32], index: 3, kind: input, shape index: {}]
  %s4 = inlined_call_operand.vmem [shape: f32[1,8], index: 4, kind: input, shape index: {}]
  %s5 = inlined_call_operand.vmem [shape: f32[16,8], index: 5, kind: output, shape index: {}]
  %s6 = sld [smem:[#allocation0]]
  $region30: #{forward.1} parent=0
    _
  %s8 = ssub.s32 1, %s6
  %s9 = scalar_select 0, %s8, %s6
  // Predicated region
  $region2: #{forward.1} parent=0 // pred_check
    _
  $region3: #{forward.1} parent=0 // pred_check_branch
    %11 = sbr.rel (0) target = $region5
  $region4: #{forward.1} parent=0 // pred_region
    _
  $region5: #{forward.1} parent=0 // pred_fallthru
    _
  // Predicated region
  $region6: #{forward.1} parent=0 // pred_check
    _
  $region7: #{forward.1} parent=0 // pred_check_branch
    %13 = sbr.rel (0) target = $region9
  $region8: #{forward.1} parent=0 // pred_region
    _
  $region9: #{forward.1} parent=0 // pred_fallthru
    _
  // Predicated region
  $region10: #{forward.1} parent=0 // pred_check
    _
  $region11: #{forward.1} parent=0 // pred_check_branch
    %15 = sbr.rel (0) target = $region13
  $region12: #{forward.1} parent=0 // pred_region
    _
  $region13: #{forward.1} parent=0 // pred_fallthru
    _
  // Predicated region
  $region14: #{forward.1} parent=0 // pred_check
    _
  $region15: #{forward.1} parent=0 // pred_check_branch
    %17 = sbr.rel (0) target = $region17
  $region16: #{forward.1} parent=0 // pred_region
    _
  $region17: #{forward.1} parent=0 // pred_fallthru
    _
  // Predicated region
  $region18: #{forward.1} parent=0 // pred_check
    _
  $region19: #{forward.1} parent=0 // pred_check_branch
    %19 = sbr.rel (0) target = $region21
  $region20: #{forward.1} parent=0 // pred_region
    _
  $region21: #{forward.1} parent=0 // pred_fallthru
    _
  %v21 = vld [vmem:[%s0] sm:$0xff]
  %v22 = vld [vmem:[%s0 + $0x8] sm:$0xff]
  %v23 = vpack.c.bf16 %v22, %v21
  %v24 = vld [vmem:[%s1] sm:$0xf]
  %v25 = vld [vmem:[%s1 + $0x4] sm:$0xf]
  %v26 = vld [vmem:[%s3] sm:$0x1]
  %v28 = vlaneseq
  %v29 = vshrl.u32 %v28, 7
  %v30 = vsub.s32 0, %v29
  %v31 = vrot.slane %v26, %v30
  %v35 = vunpack.c.l.b16 %v24
  %v36 = vunpack.c.l.b16 %v25
  %v37 = vpack.c.b16 %v36, %v35
  %vm39 = vcmask 130048
  %v41 = vsel %vm39, %v23, 0
  %43 = vmatprep.subr.bf16.mxu0 0
  %44 = vmatpush1.bf16.msra.mxu0 %v37
  %45 = vmatprep.subr.bf16.mxu0 0
  %46 = vmatpush1.bf16.msra.mxu0 0
  %47 = vmatprep.subr.bf16.mxu0 0
  %48 = vmatpush1.bf16.msra.mxu0 0
  %49 = vmatprep.subr.bf16.mxu0 0
  %50 = vmatpush1.bf16.msra.mxu0 0
  %51 = vmatprep.subr.bf16.mxu0 0
  %52 = vmatpush1.bf16.msra.mxu0 0
  %53 = vmatprep.subr.bf16.mxu0 0
  %54 = vmatpush1.bf16.msra.mxu0 0
  %55 = vmatprep.subr.bf16.mxu0 0
  %56 = vmatpush1.bf16.msra.mxu0 0
  %57 = vmatprep.subr.bf16.mxu0 0
  %58 = vmatpush1.bf16.msra.mxu0 0
  %59 = vmatprep.subr.bf16.mxu0 0
  %60 = vmatpush1.bf16.msra.mxu0 0
  %61 = vmatprep.subr.bf16.mxu0 0
  %62 = vmatpush1.bf16.msra.mxu0 0
  %63 = vmatprep.subr.bf16.mxu0 0
  %64 = vmatpush1.bf16.msra.mxu0 0
  %65 = vmatprep.subr.bf16.mxu0 0
  %66 = vmatpush1.bf16.msra.mxu0 0
  %67 = vmatprep.subr.bf16.mxu0 0
  %68 = vmatpush1.bf16.msra.mxu0 0
  %69 = vmatprep.subr.bf16.mxu0 0
  %70 = vmatpush1.bf16.msra.mxu0 0
  %71 = vmatprep.subr.bf16.mxu0 0
  %72 = vmatpush1.bf16.msra.mxu0 0
  %73 = vmatprep.subr.bf16.mxu0 0
  %74 = vmatpush1.bf16.msra.mxu0 0
  %75 = vmatprep.mubr.bf16.mxu0 0
  %76 = vmatmul.mubr.bf16.gmra.mrb[0].mxu0 %v41
  %v77 = vpop.f32.mrb[0].mxu0
  %v78 = vadd.f32 %v31, %v77
  %v79 = vpop.f32.mrb[0].mxu0
  %v80 = vpop.f32.mrb[0].mxu0
  %v81 = vadd.f32 %v31, %v80
  %v82 = vpop.f32.mrb[0].mxu0
  %83 = vdwg.mxu0
  %v84 = vtanh.pop %v78
  %v85 = vtanh.pop %v81
  %v86 = vpack.c.bf16 %v85, %v84
  %v87 = vld [vmem:[%s2] sm:$0xf]
  %v88 = vld [vmem:[%s2 + $0x4] sm:$0xf]
  %v89 = vld [vmem:[%s2 + $0x8] sm:$0xf]
  %v90 = vld [vmem:[%s2 + $0xc] sm:$0xf]
  %v91 = vld [vmem:[%s4] sm:$0x1]
  %v93 = vlaneseq
  %v94 = vshrl.u32 %v93, 7
  %v95 = vsub.s32 0, %v94
  %v96 = vrot.slane %v91, %v95
  %v102 = vunpack.c.l.b16 %v87
  %v103 = vunpack.c.l.b16 %v88
  %v104 = vunpack.c.l.b16 %v89
  %v105 = vunpack.c.l.b16 %v90
  %v106 = vpack.c.b16 %v103, %v102
  %v107 = vpack.c.b16 %v105, %v104
  %vm110 = vcmask 261120
  %v112 = vsel %vm110, %v86, 0
  %114 = vmatprep.subr.bf16.mxu0 0
  %115 = vmatpush1.bf16.msra.mxu0 %v106
  %116 = vmatprep.subr.bf16.mxu0 0
  %117 = vmatpush1.bf16.msra.mxu0 %v107
  %118 = vmatprep.subr.bf16.mxu0 0
  %119 = vmatpush1.bf16.msra.mxu0 0
  %120 = vmatprep.subr.bf16.mxu0 0
  %121 = vmatpush1.bf16.msra.mxu0 0
  %122 = vmatprep.subr.bf16.mxu0 0
  %123 = vmatpush1.bf16.msra.mxu0 0
  %124 = vmatprep.subr.bf16.mxu0 0
  %125 = vmatpush1.bf16.msra.mxu0 0
  %126 = vmatprep.subr.bf16.mxu0 0
  %127 = vmatpush1.bf16.msra.mxu0 0
  %128 = vmatprep.subr.bf16.mxu0 0
  %129 = vmatpush1.bf16.msra.mxu0 0
  %130 = vmatprep.subr.bf16.mxu0 0
  %131 = vmatpush1.bf16.msra.mxu0 0
  %132 = vmatprep.subr.bf16.mxu0 0
  %133 = vmatpush1.bf16.msra.mxu0 0
  %134 = vmatprep.subr.bf16.mxu0 0
  %135 = vmatpush1.bf16.msra.mxu0 0
  %136 = vmatprep.subr.bf16.mxu0 0
  %137 = vmatpush1.bf16.msra.mxu0 0
  %138 = vmatprep.subr.bf16.mxu0 0
  %139 = vmatpush1.bf16.msra.mxu0 0
  %140 = vmatprep.subr.bf16.mxu0 0
  %141 = vmatpush1.bf16.msra.mxu0 0
  %142 = vmatprep.subr.bf16.mxu0 0
  %143 = vmatpush1.bf16.msra.mxu0 0
  %144 = vmatprep.subr.bf16.mxu0 0
  %145 = vmatpush1.bf16.msra.mxu0 0
  %146 = vmatprep.mubr.bf16.mxu0 0
  %147 = vmatmul.mubr.bf16.gmra.mrb[0].mxu0 %v112
  %v148 = vpop.f32.mrb[0].mxu0
  %v149 = vadd.f32 %v96, %v148
  %v150 = vpop.f32.mrb[0].mxu0
  %v151 = vpop.f32.mrb[0].mxu0
  %v152 = vadd.f32 %v96, %v151
  %v153 = vpop.f32.mrb[0].mxu0
  %154 = vdwg.mxu0
  %vm155 = vcmask 64512
  %156 = vst.msk [vmem:[%s5] sm:$0xff] %vm155, %v149
  %157 = vst.msk [vmem:[%s5 + $0x8] sm:$0xff] %vm155, %v152
  // Predicated region
  $region22: #{forward.1} parent=0 // pred_check
    _
  $region23: #{forward.1} parent=0 // pred_check_branch
    %159 = sbr.rel (0) target = $region25
  $region24: #{forward.1} parent=0 // pred_region
    _
  $region25: #{forward.1} parent=0 // pred_fallthru
    _
  // Predicated region
  $region26: #{forward.1} parent=0 // pred_check
    _
  $region27: #{forward.1} parent=0 // pred_check_branch
    %161 = sbr.rel (0) target = $region29
  $region28: #{forward.1} parent=0 // pred_region
    _
  $region29: #{forward.1} parent=0 // pred_fallthru
    _

</llo_original>
